<compile_context>
chip_gen: v5e
topology: v5e:2x2
jax: 0.10.0
libtpu: 0.0.40
codegen_flags: <defaults>
</compile_context>

<pallas_src>
import jax
import jax.numpy as jnp
from jax import lax
from jax.experimental import pallas as pl
from jax.experimental.pallas import tpu as pltpu

C_IN, C_MID, C_OUT = 3, 12, 3
K1, S1, P1 = 3, 2, 1          # conv:   kernel 3, stride 2, pad 1
K2, S2 = 2, 2                 # deconv: kernel 2, stride 2, pad 0
N_TAPS = K1 * K1 * C_IN       # 27  (sublane axis of im2col)
N_DEC = K2 * K2 * C_OUT       # 12  (rows of the fused weight / output)
LANE = 128


def _round_up(a, b):
    return (a + b - 1) // b * b


def _fused_kernel(cols_ref, w_ref, b_ref, o_ref):
    # cols_ref: (27, TM)  im2col tile  — taps*channels on sublane, spatial on lanes
    # w_ref   : (12, 27)  fused conv∘deconv weight
    # b_ref   : (12, 1)   fused bias
    # o_ref   : (12, TM)  fused output tile (lane-dense)
    o_ref[...] = (
        jnp.dot(w_ref[...], cols_ref[...], preferred_element_type=jnp.float32)
        + b_ref[...]
    )


def simple_model_forward(x_nchw, params):
    w1_pt, b1, w2_pt, b2 = params   # (12,3,3,3), (12,), (12,3,2,2), (3,)
    n, c, h, w = x_nchw.shape
    oh = (h + 2 * P1 - K1) // S1 + 1
    ow = (w + 2 * P1 - K1) // S1 + 1
    m_total = n * oh * ow

    # ---------- glue: lane-dense im2col (pure indexing, no MACs) ----------
    x_pad = jnp.pad(x_nchw, ((0, 0), (0, 0), (P1, P1), (P1, P1)))
    taps = []
    for kh in range(K1):
        for kw in range(K1):
            # strided tap extraction: (N, C_IN, OH, OW)
            taps.append(x_pad[:, :, kh:kh + S1 * oh:S1, kw:kw + S1 * ow:S1])
    cols = jnp.stack(taps, axis=0)                 # (9, N, C_IN, OH, OW)
    cols = cols.transpose(0, 2, 1, 3, 4)           # (9, C_IN, N, OH, OW)
    cols = cols.reshape(N_TAPS, m_total)           # p = (kh*3+kw)*3 + ci

    # pad flattened spatial up to a lane-dense tile multiple
    tm = min(1024, _round_up(m_total, LANE))
    m_pad = _round_up(m_total, tm)
    cols = jnp.pad(cols, ((0, 0), (0, m_pad - m_total)))

    # ---------- glue: algebraic fusion of the two linear layers ----------
    # w1_flat[cm, p=(kh,kw,ci)] ; w2_flat[cm, q=(dh,dw,co)]
    w1_flat = jnp.transpose(w1_pt, (0, 2, 3, 1)).reshape(C_MID, N_TAPS)
    w2_flat = jnp.transpose(w2_pt, (0, 2, 3, 1)).reshape(C_MID, N_DEC)
    w_fused = w2_flat.T @ w1_flat                          # (12, 27)
    b_fused = (b1 @ w2_flat + jnp.tile(b2, K2 * K2))       # (12,)
    b_fused = b_fused.reshape(N_DEC, 1)

    # ---------- Pallas: single fused matmul over lane tiles ----------
    out = pl.pallas_call(
        _fused_kernel,
        out_shape=jax.ShapeDtypeStruct((N_DEC, m_pad), jnp.float32),
        grid_spec=pltpu.PrefetchScalarGridSpec(
            num_scalar_prefetch=0,
            grid=(m_pad // tm,),
            in_specs=[
                pl.BlockSpec((N_TAPS, tm), lambda m: (0, m)),
                pl.BlockSpec((N_DEC, N_TAPS), lambda m: (0, 0)),
                pl.BlockSpec((N_DEC, 1), lambda m: (0, 0)),
            ],
            out_specs=pl.BlockSpec((N_DEC, tm), lambda m: (0, m)),
        ),
        compiler_params=pltpu.CompilerParams(
            dimension_semantics=("parallel",)),
    )(cols, w_fused, b_fused)

    # ---------- glue: scatter deconv taps back to spatial positions ----------
    out = out[:, :m_total]                                   # (12, N*OH*OW)
    out = out.reshape(K2, K2, C_OUT, n, oh, ow)              # (dh, dw, co, n, i, j)
    out = out.transpose(3, 2, 4, 0, 5, 1)                    # (n, co, i, dh, j, dw)
    out = out.reshape(n, C_OUT, oh * K2, ow * K2)            # NCHW
    return out


def reference_forward(x_nchw, params):
    """Pure-JAX reference with PyTorch semantics."""
    w1_pt, b1, w2_pt, b2 = params
    y = lax.conv_general_dilated(
        x_nchw, w1_pt, window_strides=(S1, S1),
        padding=((P1, P1), (P1, P1)),
        dimension_numbers=("NCHW", "OIHW", "NCHW"))
    y = y + b1[None, :, None, None]
    n, _, oh, ow = y.shape
    # ConvTranspose2d with kernel==stride, padding 0:
    # out[n, co, 2i+dh, 2j+dw] = sum_ci y[n, ci, i, j] * w[ci, co, dh, dw] + b[co]
    out = jnp.einsum("ncij,cokl->noikjl", y, w2_pt)
    out = out.reshape(n, C_OUT, oh * K2, ow * K2)
    return out + b2[None, :, None, None]


if __name__ == "__main__":
    key = jax.random.PRNGKey(0)
    k_x, k_w1, k_b1, k_w2, k_b2 = jax.random.split(key, 5)

    N, H, W = 2, 16, 16
    x = jax.random.normal(k_x, (N, C_IN, H, W), jnp.float32)

    # deterministic synthetic parameters (shapes from the module __init__)
    w1 = jax.random.normal(k_w1, (C_MID, C_IN, K1, K1), jnp.float32) * 0.1
    b1 = jax.random.normal(k_b1, (C_MID,), jnp.float32) * 0.1
    w2 = jax.random.normal(k_w2, (C_MID, C_OUT, K2, K2), jnp.float32) * 0.1
    b2 = jax.random.normal(k_b2, (C_OUT,), jnp.float32) * 0.1
    params = (w1, b1, w2, b2)

    out = jax.jit(simple_model_forward)(x, params)
    out = jax.block_until_ready(out)

    ref = reference_forward(x, params)
    assert out.shape == (N, C_OUT, H, W), out.shape
    assert jnp.allclose(out, ref, atol=1e-4, rtol=1e-4), \
        float(jnp.max(jnp.abs(out - ref)))
    print("KERNEL_OK")
</pallas_src>

<mosaic_0001>
module attributes {stable_mosaic.version = 11 : i64} {
  func.func @_fused_kernel(%arg0: i32, %arg1: memref<27x128xf32, #tpu.memory_space<vmem>>, %arg2: memref<12x27xf32, #tpu.memory_space<vmem>>, %arg3: memref<12x1xf32, #tpu.memory_space<vmem>>, %arg4: memref<12x128xf32, #tpu.memory_space<vmem>>) attributes {dimension_semantics = [#tpu.dimension_semantics<parallel>], iteration_bounds = array<i64: 1>, scalar_prefetch = 0 : i64, scratch_operands = 0 : i64, tpu.core_type = #tpu.core_type<tc>, window_params = [{transform_indices = @transform_0, window_bounds = array<i64: 27, 128>}, {pipeline_mode = #tpu.pipeline_mode<synchronous>, transform_indices = @transform_1, window_bounds = array<i64: 12, 27>}, {pipeline_mode = #tpu.pipeline_mode<synchronous>, transform_indices = @transform_2, window_bounds = array<i64: 12, 1>}, {transform_indices = @transform_3, window_bounds = array<i64: 12, 128>}]} {
    %c0 = arith.constant 0 : index
    %c0_0 = arith.constant 0 : index
    %0 = vector.load %arg2[%c0, %c0_0] : memref<12x27xf32, #tpu.memory_space<vmem>>, vector<12x27xf32>
    %c0_1 = arith.constant 0 : index
    %c0_2 = arith.constant 0 : index
    %1 = vector.load %arg1[%c0_1, %c0_2] : memref<27x128xf32, #tpu.memory_space<vmem>>, vector<27x128xf32>
    %cst = arith.constant dense<0.000000e+00> : vector<12x128xf32>
    %2 = tpu.matmul %0, %1, %cst {dimension_numbers = #tpu.dot_dimension_numbers<[1], [0], [0], [1], [0, 0, 1, 1], [], []>} : vector<12x27xf32>, vector<27x128xf32>, vector<12x128xf32> -> vector<12x128xf32>
    %c0_3 = arith.constant 0 : index
    %c0_4 = arith.constant 0 : index
    %3 = vector.load %arg3[%c0_3, %c0_4] : memref<12x1xf32, #tpu.memory_space<vmem>>, vector<12x1xf32>
    %4 = vector.broadcast %3 : vector<12x1xf32> to vector<12x128xf32>
    %5 = arith.addf %2, %4 : vector<12x128xf32>
    %c0_5 = arith.constant 0 : index
    %c0_6 = arith.constant 0 : index
    %6 = vector.load %arg4[%c0_5, %c0_6] : memref<12x128xf32, #tpu.memory_space<vmem>>, vector<12x128xf32>
    tpu.vector_store %arg4[%c0_5, %c0_6], %5 {strides = array<i32>} : memref<12x128xf32, #tpu.memory_space<vmem>>, vector<12x128xf32>,
    return
  }
  func.func @transform_0(%arg0: i32) -> (i32, i32) {
    %c0_i32 = arith.constant 0 : i32
    %c0_i32_0 = arith.constant 0 : i32
    return %c0_i32, %arg0 : i32, i32
  }
  func.func @transform_1(%arg0: i32) -> (i32, i32) {
    %c0_i32 = arith.constant 0 : i32
    %c0_i32_0 = arith.constant 0 : i32
    %c0_i32_1 = arith.constant 0 : i32
    return %c0_i32, %c0_i32_0 : i32, i32
  }
  func.func @transform_2(%arg0: i32) -> (i32, i32) {
    %c0_i32 = arith.constant 0 : i32
    %c0_i32_0 = arith.constant 0 : i32
    %c0_i32_1 = arith.constant 0 : i32
    return %c0_i32, %c0_i32_0 : i32, i32
  }
  func.func @transform_3(%arg0: i32) -> (i32, i32) {
    %c0_i32 = arith.constant 0 : i32
    %c0_i32_0 = arith.constant 0 : i32
    return %c0_i32, %arg0 : i32, i32
  }
}

</mosaic_0001>

<llo_original>
// kernel: tile.8
$region0: #{tile.8}
  #allocation0 [shape = 's32[1]{0}', space=sflag, size = 0x4, scoped, tag = 'scoped memory for tile.8']
  %s0 = inlined_call_operand.vmem [shape: f32[3], index: 0, kind: input, shape index: {}]
  %s1 = inlined_call_operand.vmem [shape: f32[4,3], index: 1, kind: output, shape index: {}]
  // Predicated region
  $region2: #{tile.8} parent=0 // pred_check
    _
  $region3: #{tile.8} parent=0 // pred_check_branch
    %3 = sbr.rel (0) target = $region5
  $region4: #{tile.8} parent=0 // pred_region
    _
  $region5: #{tile.8} parent=0 // pred_fallthru
    _
  %v4 = vld [vmem:[%s0] ss:$0 sm:$0xff]
  %5 = vst [vmem:[%s1] sm:$0xf] %v4

// kernel: simple_model_forward.1
$region0: #{simple_model_forward.1}
  #allocation0 [shape = 'u32[]', space=smem, size = 0x4, offset = 0x4, fixed_abs, tag = 'smem constant byte address 0x4 - core index']
  #allocation1 [shape = 'u32[72,128]{1,0:T(1,128)}', space=vmem, size = 0x9000, scoped, tag = 'internal scratch']
  %s0 = inlined_call_operand.vmem [shape: f32[27,128], index: 0, kind: input, shape index: {}]
  %s1 = inlined_call_operand.vmem [shape: f32[12,27], index: 1, kind: input, shape index: {}]
  %s2 = inlined_call_operand.vmem [shape: f32[12,1], index: 2, kind: input, shape index: {}]
  %s3 = inlined_call_operand.vmem [shape: f32[12,128], index: 3, kind: output, shape index: {}]
  %s4 = sld [smem:[#allocation0]]
  $region22: #{simple_model_forward.1} parent=0
    _
  %s6 = ssub.s32 1, %s4
  %s7 = scalar_select 0, %s6, %s4
  // Predicated region
  $region2: #{simple_model_forward.1} parent=0 // pred_check
    _
  $region3: #{simple_model_forward.1} parent=0 // pred_check_branch
    %9 = sbr.rel (0) target = $region5
  $region4: #{simple_model_forward.1} parent=0 // pred_region
    _
  $region5: #{simple_model_forward.1} parent=0 // pred_fallthru
    _
  // Predicated region
  $region6: #{simple_model_forward.1} parent=0 // pred_check
    _
  $region7: #{simple_model_forward.1} parent=0 // pred_check_branch
    %11 = sbr.rel (0) target = $region9
  $region8: #{simple_model_forward.1} parent=0 // pred_region
    _
  $region9: #{simple_model_forward.1} parent=0 // pred_fallthru
    _
  // Predicated region
  $region10: #{simple_model_forward.1} parent=0 // pred_check
    _
  $region11: #{simple_model_forward.1} parent=0 // pred_check_branch
    %13 = sbr.rel (0) target = $region13
  $region12: #{simple_model_forward.1} parent=0 // pred_region
    _
  $region13: #{simple_model_forward.1} parent=0 // pred_fallthru
    _
  %v14 = vld [vmem:[%s1] sm:$0xff]
  %v15 = vld [vmem:[%s1 + $0x8] sm:$0xf]
  %v16 = vld [vmem:[%s0] sm:$0xff]
  %v17 = vld [vmem:[%s0 + $0x8] sm:$0xff]
  %v18 = vld [vmem:[%s0 + $0x10] sm:$0xff]
  %v19 = vld [vmem:[%s0 + $0x18] sm:$0x7]
  %v20 = vld [vmem:[%s2] sm:$0xff]
  %v21 = vld [vmem:[%s2 + $0x8] sm:$0xf]
  %23 = vset.pattern.permute.xlu0 0
  %24 = vperm.xlu0 %23, %v20
  %v25 = vpop.permute.xlu0 %24
  %28 = vset.pattern.permute.xlu0 0
  %29 = vperm.xlu0 %28, %v21
  %v30 = vpop.permute.xlu0 %29
  %vm32 = vcmask 220160
  %v34 = vsel %vm32, %v14, 0
  %v37 = vsel %vm32, %v15, 0
  %vm39 = vcmask 1042432
  %v41 = vsel %vm39, %v19, 0
  %43 = vmatpush.msra.mxu0 0.0
  %44 = vmatpush.msra.mxu0 0.0
  %45 = vmatpush.msra.mxu0 0.0
  %46 = vmatpush.msra.mxu0 0.0
  %47 = vmatpush.msra.mxu0 0.0
  %48 = vmatpush.msra.mxu0 0.0
  %49 = vmatpush.msra.mxu0 0.0
  %50 = vmatpush.msra.mxu0 0.0
  %51 = vmatpush.msra.mxu0 0.0
  %52 = vmatpush.msra.mxu0 0.0
  %53 = vmatpush.msra.mxu0 0.0
  %54 = vmatpush.msra.mxu0 0.0
  %55 = vmatpush.msra.mxu0 %v41
  %56 = vmatpush.msra.mxu0 %v18
  %57 = vmatpush.msra.mxu0 %v17
  %58 = vmatpush.msra.mxu0 %v16
  %59 = vmatmul.f32.gmra.mxu0 %v34
  %v60 = vpop.f32.mrf.mxu0
  %v61 = vadd.f32 %v25, %v60
  %62 = vmatmul.f32.gmra.mxu0 %v37
  %v63 = vpop.f32.mrf.mxu0
  %v64 = vadd.f32 %v30, %v63
  %65 = vdwg.mxu0
  %66 = vst [vmem:[%s3] sm:$0xff] %v61
  %67 = vst [vmem:[%s3 + $0x8] sm:$0xf] %v64
  // Predicated region
  $region14: #{simple_model_forward.1} parent=0 // pred_check
    _
  $region15: #{simple_model_forward.1} parent=0 // pred_check_branch
    %69 = sbr.rel (0) target = $region17
  $region16: #{simple_model_forward.1} parent=0 // pred_region
    _
  $region17: #{simple_model_forward.1} parent=0 // pred_fallthru
    _
  // Predicated region
  $region18: #{simple_model_forward.1} parent=0 // pred_check
    _
  $region19: #{simple_model_forward.1} parent=0 // pred_check_branch
    %71 = sbr.rel (0) target = $region21
  $region20: #{simple_model_forward.1} parent=0 // pred_region
    _
  $region21: #{simple_model_forward.1} parent=0 // pred_fallthru
    _

</llo_original>
